<compile_context>
chip_gen: v7x
topology: tpu7x:2x2x1
jax: 0.10.0
libtpu: 0.0.40
codegen_flags: <defaults>
</compile_context>

<pallas_src>
import math

import jax
import jax.numpy as jnp
from jax.experimental import pallas as pl
from jax.experimental.pallas import tpu as pltpu

# ------------------------- Synthetic Config constants -------------------------
GF, PC, SC = 8, 16, 8            # global / piece-centric / square-centric feats
D_IN = GF + PC + SC              # 32
H1A, H1B, H1C = 16, 32, 16       # first-layer widths (concat -> 64)
H1 = H1A + H1B + H1C             # 64
H2P, H2E = 64, 32                # policy / eval hidden widths
H2 = H2P + H2E                   # 96 (fused second layer)
D_OUT = 16                       # policy logits
EVAL_OUT = 1
GAME_SCORE = 20.0                # Config.GAME_SCORE (synthetic value)
BATCH = 16

# ----------------------- Packed-parameter blob layout -------------------------
# One (PARAM_ROWS, 128) f32 array; every block starts on an 8-row boundary or
# lives inside the single trailing bias tile. Lanes beyond each block are zero.
LANES = 128
W1_R0 = 0                        # rows   0.. 31 : w1   (D_IN, H1)  lanes 0:64
W2_R0 = 32                       # rows  32.. 95 : w2   (H1, H2)    lanes 0:96
W3P_R0 = 96                      # rows  96..159 : w3p  (H2P, D_OUT) lanes 0:16
ROW_B1 = 160                     # b1  (1, H1)   lanes 0:64
ROW_B2 = 161                     # b2  (1, H2)   lanes 0:96
ROW_B3P = 162                    # b3p (1, D_OUT) lanes 0:16
ROW_W3E = 163                    # w3e (1, H2E)  lanes 64:96 (zeros in 0:64)
ROW_B3E = 164                    # b3e (1, 1)    lane 0
PARAM_ROWS = 168                 # rounded up to a whole 8-row tile


# ------------------------------- Pallas kernel --------------------------------
def _giraffe_kernel(x_ref, params_ref, out_ref):
    f32 = jnp.float32
    x = x_ref[...]                                            # (B, 32)

    # Fused first layer (block-diagonal over gf/pc/sc splits) + ReLU.
    w1 = params_ref[W1_R0:W1_R0 + D_IN, 0:H1]                 # (32, 64)
    b1 = params_ref[ROW_B1:ROW_B1 + 1, 0:H1]                  # (1, 64)
    h1 = jnp.maximum(jnp.dot(x, w1, preferred_element_type=f32) + b1, 0.0)

    # Fused second layer: [w2p | w2e] in one MXU pass, ReLU on all 96 lanes.
    w2 = params_ref[W2_R0:W2_R0 + H1, 0:H2]                   # (64, 96)
    b2 = params_ref[ROW_B2:ROW_B2 + 1, 0:H2]                  # (1, 96)
    h2 = jnp.maximum(jnp.dot(h1, w2, preferred_element_type=f32) + b2, 0.0)

    # Policy branch: lane-aligned prefix slice -> linear3p -> log_softmax.
    h2p = h2[:, 0:H2P]                                        # (B, 64)
    w3p = params_ref[W3P_R0:W3P_R0 + H2P, 0:D_OUT]            # (64, 16)
    b3p = params_ref[ROW_B3P:ROW_B3P + 1, 0:D_OUT]            # (1, 16)
    logits = jnp.dot(h2p, w3p, preferred_element_type=f32) + b3p
    m = jnp.max(logits, axis=-1, keepdims=True)
    z = logits - m
    lse = jnp.log(jnp.sum(jnp.exp(z), axis=-1, keepdims=True))
    out_ref[:, 0:D_OUT] = (z - lse).astype(out_ref.dtype)

    # Value branch: w3e is pre-placed at lanes 64:96 (zeros elsewhere), so a
    # multiply + lane-reduce over all 96 lanes equals linear3e(relu(h2e))
    # exactly and needs no lane realignment.
    w3e = params_ref[ROW_W3E:ROW_W3E + 1, 0:H2]               # (1, 96)
    b3e = params_ref[ROW_B3E:ROW_B3E + 1, 0:1]                # (1, 1)
    e = jnp.sum(h2 * w3e, axis=-1, keepdims=True) + b3e       # (B, 1)
    out_ref[:, D_OUT:D_OUT + EVAL_OUT] = (
        GAME_SCORE * jnp.tanh(e)).astype(out_ref.dtype)


# -------------------------- One-time parameter packing -------------------------
def pack_params(params):
    """Build the packed (PARAM_ROWS, 128) VMEM blob ONCE at param-load time.

    This is deliberately outside the per-forward call path (perf review): the
    block-diagonal w1, the [w2p|w2e] fusion, bias concat and w3e placement are
    all done here so the forward pass is a single 2-input pallas_call.
    """
    blob = jnp.zeros((PARAM_ROWS, LANES), jnp.float32)
    # First layer: block-diagonal over the gf/pc/sc feature splits (exact).
    blob = blob.at[W1_R0 + 0:W1_R0 + GF, 0:H1A].set(params["w1a"])
    blob = blob.at[W1_R0 + GF:W1_R0 + GF + PC, H1A:H1A + H1B].set(params["w1b"])
    blob = blob.at[W1_R0 + GF + PC:W1_R0 + D_IN, H1A + H1B:H1].set(params["w1c"])
    # Second layer: [w2p | w2e].
    blob = blob.at[W2_R0:W2_R0 + H1, 0:H2P].set(params["w2p"])
    blob = blob.at[W2_R0:W2_R0 + H1, H2P:H2].set(params["w2e"])
    # Third layer (policy).
    blob = blob.at[W3P_R0:W3P_R0 + H2P, 0:D_OUT].set(params["w3p"])
    # Biases + eval row vector, all inside one trailing 8-row tile.
    blob = blob.at[ROW_B1:ROW_B1 + 1, 0:H1A].set(params["b1a"])
    blob = blob.at[ROW_B1:ROW_B1 + 1, H1A:H1A + H1B].set(params["b1b"])
    blob = blob.at[ROW_B1:ROW_B1 + 1, H1A + H1B:H1].set(params["b1c"])
    blob = blob.at[ROW_B2:ROW_B2 + 1, 0:H2P].set(params["b2p"])
    blob = blob.at[ROW_B2:ROW_B2 + 1, H2P:H2].set(params["b2e"])
    blob = blob.at[ROW_B3P:ROW_B3P + 1, 0:D_OUT].set(params["b3p"])
    blob = blob.at[ROW_W3E:ROW_W3E + 1, H2P:H2].set(params["w3e"].reshape(1, H2E))
    blob = blob.at[ROW_B3E:ROW_B3E + 1, 0:1].set(params["b3e"])
    return blob


# ----------------------------------- Wrapper -----------------------------------
def policy_val_network_giraffe(x, packed_params):
    """Fused forward pass of PolicyValNetwork_Giraffe.

    x: (B, D_IN) float32, features ordered [gf | pc | sc].
    packed_params: output of pack_params (built once, reused every call).
    Returns (p_out, val_out): (B, D_OUT) log-probs and (B, 1) scaled tanh value.
    """
    B, d_in = x.shape
    assert d_in == D_IN

    vmem = pl.BlockSpec(memory_space=pltpu.MemorySpace.VMEM)
    cost = pl.CostEstimate(
        flops=2 * B * (D_IN * H1 + H1 * H2 + H2P * D_OUT + H2E),
        transcendentals=B * (D_OUT + 2),
        bytes_accessed=4 * (x.size + packed_params.size + B * (D_OUT + EVAL_OUT)),
    )

    out = pl.pallas_call(
        _giraffe_kernel,
        out_shape=jax.ShapeDtypeStruct((B, D_OUT + EVAL_OUT), jnp.float32),
        in_specs=[vmem, vmem],
        out_specs=vmem,
        cost_estimate=cost,
    )(x, packed_params)
    return out[:, :D_OUT], out[:, D_OUT:D_OUT + EVAL_OUT]


# ------------------------- Deterministic param init ---------------------------
def init_params(key):
    """Mimic nn.Linear default init: U(-1/sqrt(fan_in), 1/sqrt(fan_in)).

    Weights stored as (in_features, out_features), biases as (1, out_features).
    """
    def linear(k, fan_in, fan_out):
        kw, kb = jax.random.split(k)
        bound = 1.0 / math.sqrt(fan_in)
        w = jax.random.uniform(kw, (fan_in, fan_out), jnp.float32,
                               minval=-bound, maxval=bound)
        b = jax.random.uniform(kb, (1, fan_out), jnp.float32,
                               minval=-bound, maxval=bound)
        return w, b

    ks = jax.random.split(key, 7)
    w1a, b1a = linear(ks[0], GF, H1A)
    w1b, b1b = linear(ks[1], PC, H1B)
    w1c, b1c = linear(ks[2], SC, H1C)
    w2p, b2p = linear(ks[3], H1, H2P)
    w2e, b2e = linear(ks[4], H1, H2E)
    w3p, b3p = linear(ks[5], H2P, D_OUT)
    w3e, b3e = linear(ks[6], H2E, EVAL_OUT)
    return dict(w1a=w1a, b1a=b1a, w1b=w1b, b1b=b1b, w1c=w1c, b1c=b1c,
                w2p=w2p, b2p=b2p, w2e=w2e, b2e=b2e,
                w3p=w3p, b3p=b3p, w3e=w3e, b3e=b3e)


# ----------------------------------- Main --------------------------------------
if __name__ == "__main__":
    key = jax.random.PRNGKey(0)
    kx, kp = jax.random.split(key)

    x = jax.random.normal(kx, (BATCH, D_IN), jnp.float32)
    params = init_params(kp)

    # One-time packing, hoisted out of the per-call path.
    packed = jax.block_until_ready(pack_params(params))

    p_out, v_out = policy_val_network_giraffe(x, packed)
    p_out, v_out = jax.block_until_ready((p_out, v_out))

    # Pure-JAX reference, faithful to the PyTorch forward (slice -> 3 linears
    # -> concat -> two heads).
    x1, x2, x3 = x[:, :GF], x[:, GF:GF + PC], x[:, GF + PC:]
    h1a = jax.nn.relu(x1 @ params["w1a"] + params["b1a"])
    h1b = jax.nn.relu(x2 @ params["w1b"] + params["b1b"])
    h1c = jax.nn.relu(x3 @ params["w1c"] + params["b1c"])
    h1 = jnp.concatenate([h1a, h1b, h1c], axis=1)
    h2p = jax.nn.relu(h1 @ params["w2p"] + params["b2p"])
    p_ref = jax.nn.log_softmax(h2p @ params["w3p"] + params["b3p"], axis=1)
    h2e = jax.nn.relu(h1 @ params["w2e"] + params["b2e"])
    v_ref = GAME_SCORE * jnp.tanh(h2e @ params["w3e"] + params["b3e"])

    assert p_out.shape == (BATCH, D_OUT)
    assert v_out.shape == (BATCH, EVAL_OUT)
    assert jnp.allclose(p_out, p_ref, atol=1e-4, rtol=1e-4)
    assert jnp.allclose(v_out, v_ref, atol=1e-4, rtol=1e-4)

    print("KERNEL_OK")
</pallas_src>

<mosaic_0001>
module attributes {stable_mosaic.version = 11 : i64} {
  func.func @_giraffe_kernel(%arg0: memref<16x32xf32, #tpu.memory_space<vmem>>, %arg1: memref<168x128xf32, #tpu.memory_space<vmem>>, %arg2: memref<16x17xf32, #tpu.memory_space<vmem>>) attributes {dimension_semantics = [], scalar_prefetch = 0 : i64, scratch_operands = 0 : i64, tpu.core_type = #tpu.core_type<tc>} {
    %c0 = arith.constant 0 : index
    %c0_0 = arith.constant 0 : index
    %0 = vector.load %arg0[%c0, %c0_0] : memref<16x32xf32, #tpu.memory_space<vmem>>, vector<16x32xf32>
    %c0_1 = arith.constant 0 : index
    %c0_2 = arith.constant 0 : index
    %1 = vector.load %arg1[%c0_1, %c0_2] : memref<168x128xf32, #tpu.memory_space<vmem>>, vector<32x64xf32>
    %c160 = arith.constant 160 : index
    %c0_3 = arith.constant 0 : index
    %2 = vector.load %arg1[%c160, %c0_3] : memref<168x128xf32, #tpu.memory_space<vmem>>, vector<1x64xf32>
    %cst = arith.constant dense<0.000000e+00> : vector<16x64xf32>
    %3 = tpu.matmul %0, %1, %cst {dimension_numbers = #tpu.dot_dimension_numbers<[1], [0], [0], [1], [0, 0, 1, 1], [], []>} : vector<16x32xf32>, vector<32x64xf32>, vector<16x64xf32> -> vector<16x64xf32>
    %4 = vector.broadcast %2 : vector<1x64xf32> to vector<16x64xf32>
    %5 = arith.addf %3, %4 : vector<16x64xf32>
    %cst_4 = arith.constant 0.000000e+00 : f32
    %6 = vector.broadcast %cst_4 : f32 to vector<16x64xf32>
    %7 = arith.maximumf %5, %6 : vector<16x64xf32>
    %c32 = arith.constant 32 : index
    %c0_5 = arith.constant 0 : index
    %8 = vector.load %arg1[%c32, %c0_5] : memref<168x128xf32, #tpu.memory_space<vmem>>, vector<64x96xf32>
    %c161 = arith.constant 161 : index
    %c0_6 = arith.constant 0 : index
    %9 = vector.load %arg1[%c161, %c0_6] : memref<168x128xf32, #tpu.memory_space<vmem>>, vector<1x96xf32>
    %cst_7 = arith.constant dense<0.000000e+00> : vector<16x96xf32>
    %10 = tpu.matmul %7, %8, %cst_7 {dimension_numbers = #tpu.dot_dimension_numbers<[1], [0], [0], [1], [0, 0, 1, 1], [], []>} : vector<16x64xf32>, vector<64x96xf32>, vector<16x96xf32> -> vector<16x96xf32>
    %11 = vector.broadcast %9 : vector<1x96xf32> to vector<16x96xf32>
    %12 = arith.addf %10, %11 : vector<16x96xf32>
    %cst_8 = arith.constant 0.000000e+00 : f32
    %13 = vector.broadcast %cst_8 : f32 to vector<16x96xf32>
    %14 = arith.maximumf %12, %13 : vector<16x96xf32>
    %15 = vector.extract_strided_slice %14 {offsets = [0, 0], sizes = [16, 64], strides = [1, 1]} : vector<16x96xf32> to vector<16x64xf32>
    %c96 = arith.constant 96 : index
    %c0_9 = arith.constant 0 : index
    %16 = vector.load %arg1[%c96, %c0_9] : memref<168x128xf32, #tpu.memory_space<vmem>>, vector<64x16xf32>
    %c162 = arith.constant 162 : index
    %c0_10 = arith.constant 0 : index
    %17 = vector.load %arg1[%c162, %c0_10] : memref<168x128xf32, #tpu.memory_space<vmem>>, vector<1x16xf32>
    %cst_11 = arith.constant dense<0.000000e+00> : vector<16x16xf32>
    %18 = tpu.matmul %15, %16, %cst_11 {dimension_numbers = #tpu.dot_dimension_numbers<[1], [0], [0], [1], [0, 0, 1, 1], [], []>} : vector<16x64xf32>, vector<64x16xf32>, vector<16x16xf32> -> vector<16x16xf32>
    %19 = vector.broadcast %17 : vector<1x16xf32> to vector<16x16xf32>
    %20 = arith.addf %18, %19 : vector<16x16xf32>
    %cst_12 = arith.constant dense<0xFF800000> : vector<16xf32>
    %21 = vector.multi_reduction <maximumf>, %20, %cst_12 [1] : vector<16x16xf32> to vector<16xf32>
    %22 = vector.shape_cast %21 : vector<16xf32> to vector<16x1xf32>
    %23 = vector.broadcast %22 : vector<16x1xf32> to vector<16x16xf32>
    %24 = arith.subf %20, %23 : vector<16x16xf32>
    %25 = math.exp %24 : vector<16x16xf32>
    %cst_13 = arith.constant dense<0.000000e+00> : vector<16xf32>
    %26 = vector.multi_reduction <add>, %25, %cst_13 [1] : vector<16x16xf32> to vector<16xf32>
    %27 = vector.shape_cast %26 : vector<16xf32> to vector<16x1xf32>
    %28 = math.log %27 : vector<16x1xf32>
    %29 = vector.broadcast %28 : vector<16x1xf32> to vector<16x16xf32>
    %30 = arith.subf %24, %29 : vector<16x16xf32>
    %c0_14 = arith.constant 0 : index
    %c0_15 = arith.constant 0 : index
    %31 = vector.load %arg2[%c0_14, %c0_15] : memref<16x17xf32, #tpu.memory_space<vmem>>, vector<16x16xf32>
    tpu.vector_store %arg2[%c0_14, %c0_15], %30 {strides = array<i32>} : memref<16x17xf32, #tpu.memory_space<vmem>>, vector<16x16xf32>,
    %c163 = arith.constant 163 : index
    %c0_16 = arith.constant 0 : index
    %32 = vector.load %arg1[%c163, %c0_16] : memref<168x128xf32, #tpu.memory_space<vmem>>, vector<1x96xf32>
    %c164 = arith.constant 164 : index
    %c0_17 = arith.constant 0 : index
    %33 = vector.load %arg1[%c164, %c0_17] : memref<168x128xf32, #tpu.memory_space<vmem>>, vector<1x1xf32>
    %34 = vector.broadcast %32 : vector<1x96xf32> to vector<16x96xf32>
    %35 = arith.mulf %14, %34 : vector<16x96xf32>
    %cst_18 = arith.constant dense<0.000000e+00> : vector<16xf32>
    %36 = vector.multi_reduction <add>, %35, %cst_18 [1] : vector<16x96xf32> to vector<16xf32>
    %37 = vector.shape_cast %36 : vector<16xf32> to vector<16x1xf32>
    %38 = vector.broadcast %33 : vector<1x1xf32> to vector<16x1xf32>
    %39 = arith.addf %37, %38 : vector<16x1xf32>
    %40 = math.tanh %39 : vector<16x1xf32>
    %cst_19 = arith.constant 2.000000e+01 : f32
    %41 = vector.broadcast %cst_19 : f32 to vector<16x1xf32>
    %42 = arith.mulf %41, %40 : vector<16x1xf32>
    %c0_20 = arith.constant 0 : index
    %c16 = arith.constant 16 : index
    %43 = vector.load %arg2[%c0_20, %c16] : memref<16x17xf32, #tpu.memory_space<vmem>>, vector<16x1xf32>
    tpu.vector_store %arg2[%c0_20, %c16], %42 {strides = array<i32>} : memref<16x17xf32, #tpu.memory_space<vmem>>, vector<16x1xf32>,
    return
  }
}

</mosaic_0001>

<llo_original>
// kernel: tpu_custom_call.1
$region0: #{tpu_custom_call.1}
  #allocation0 [shape = 'u32[]', space=smem, size = 0x4, offset = 0x4, fixed_abs, tag = 'smem constant byte address 0x4 - core index']
  #allocation1 [shape = 'u32[144,128]{1,0:T(1,128)}', space=vmem, size = 0x12000, scoped, tag = 'internal scratch']
  %s0 = inlined_call_operand.hbm [shape: f32[16,32], index: 0, kind: input, shape index: {}]
  %s1 = inlined_call_operand.hbm [shape: f32[168,128], index: 1, kind: input, shape index: {}]
  %s2 = inlined_call_operand.hbm [shape: f32[16,17], index: 2, kind: output, shape index: {}]
  %s3 = sld [smem:[#allocation0]]
  $region26: #{tpu_custom_call.1} parent=0
    _
  %s5 = ssub.s32 1, %s3
  %s6 = scalar_select 0, %s5, %s3
  $region1: #{tpu_custom_call.1} parent=0
    #allocation2 [shape = 'u8[8192]{0}', space=vmem, size = 0x2000, scoped, tag = 'input window, operand 0, single buffered']
    #allocation3 [shape = 's32[1]{0}', space=sflag, size = 0x4, scoped, tag = 'scoped memory for tpu_custom_call.1']
    #allocation4 [shape = 's32[1]{0}', space=sflag, size = 0x4, scoped, tag = 'scoped memory for tpu_custom_call.1']
    #allocation5 [shape = 'u8[86016]{0}', space=vmem, size = 0x15000, scoped, tag = 'input window, operand 1, single buffered']
    #allocation6 [shape = 's32[1]{0}', space=sflag, size = 0x4, scoped, tag = 'scoped memory for tpu_custom_call.1']
    #allocation7 [shape = 'u8[8192]{0}', space=vmem, size = 0x2000, scoped, tag = 'output window, operand 0, single buffered']
    %7 = vsyncpa [#allocation3], 0
    %8 = vsyncpa [#allocation6], 0
    %9 = vsyncpa [#allocation4], 0
    // Predicated region
    $region2: #{tpu_custom_call.1} parent=1 // pred_check
      _
    $region3: #{tpu_custom_call.1} parent=1 // pred_check_branch
      %11 = sbr.rel (0) target = $region5
    $region4: #{tpu_custom_call.1} parent=1 // pred_region
      %s13 = ssub.s32 256, 256
      %14 = vsyncadd [#allocation3], %s13
      %s15 = sshll.u32 [#allocation2], 4
      %s16 = int_to_ptr.vmem [resolvable:$true] %s15
      %21 = dma.hbm_to_vmem [thread:$0]  %s0, 256, %s16, [#allocation3], 128, 128, 8
    $region5: #{tpu_custom_call.1} parent=1 // pred_fallthru
      _
    // Predicated region
    $region6: #{tpu_custom_call.1} parent=1 // pred_check
      _
    $region7: #{tpu_custom_call.1} parent=1 // pred_check_branch
      %23 = sbr.rel (0) target = $region9
    $region8: #{tpu_custom_call.1} parent=1 // pred_region
      %s25 = ssub.s32 2688, 2688
      %26 = vsyncadd [#allocation6], %s25
      %s27 = sshll.u32 [#allocation5], 4
      %s28 = int_to_ptr.vmem [resolvable:$true] %s27
      %33 = dma.hbm_to_vmem [thread:$0]  %s1, 2688, %s28, [#allocation6], 128, 128, 8
    $region9: #{tpu_custom_call.1} parent=1 // pred_fallthru
      _
    // Predicated region
    $region10: #{tpu_custom_call.1} parent=1 // pred_check
      _
    $region11: #{tpu_custom_call.1} parent=1 // pred_check_branch
      %35 = sbr.rel (0) target = $region13
    $region12: #{tpu_custom_call.1} parent=1 // pred_region
      %36 = dma.done [#allocation3], 256
    $region13: #{tpu_custom_call.1} parent=1 // pred_fallthru
      _
    // Predicated region
    $region14: #{tpu_custom_call.1} parent=1 // pred_check
      _
    $region15: #{tpu_custom_call.1} parent=1 // pred_check_branch
      %38 = sbr.rel (0) target = $region17
    $region16: #{tpu_custom_call.1} parent=1 // pred_region
      %39 = dma.done [#allocation6], 2688
    $region17: #{tpu_custom_call.1} parent=1 // pred_fallthru
      _
    %v40 = vld [vmem:[#allocation2] sm:$0xff]
    %v41 = vld [vmem:[#allocation2 + $0x8] sm:$0xff]
    %v42 = vld [vmem:[#allocation5] sm:$0xff]
    %v43 = vld [vmem:[#allocation5 + $0x8] sm:$0xff]
    %v44 = vld [vmem:[#allocation5 + $0x10] sm:$0xff]
    %v45 = vld [vmem:[#allocation5 + $0x18] sm:$0xff]
    %v46 = vld [vmem:[#allocation5 + $0xa0] sm:$0x1]
    %v47 = vlaneseq
    %v48 = vshrl.u32 %v47, 7
    %v49 = vsub.s32 0, %v48
    %v50 = vrot.slane %v46, %v49
    %vm51 = vcmask 261120
    %v53 = vsel %vm51, %v40, 0
    %v56 = vsel %vm51, %v41, 0
    %58 = vmatprep.subr.mxu0 0.0
    %59 = vmatpush1.msra.mxu0 %v42
    %60 = vmatprep.subr.mxu0 0.0
    %61 = vmatpush1.msra.mxu0 %v43
    %62 = vmatprep.subr.mxu0 0.0
    %63 = vmatpush1.msra.mxu0 %v44
    %64 = vmatprep.subr.mxu0 0.0
    %65 = vmatpush1.msra.mxu0 %v45
    %66 = vmatprep.subr.mxu0 0.0
    %67 = vmatpush1.msra.mxu0 0.0
    %68 = vmatprep.subr.mxu0 0.0
    %69 = vmatpush1.msra.mxu0 0.0
    %70 = vmatprep.subr.mxu0 0.0
    %71 = vmatpush1.msra.mxu0 0.0
    %72 = vmatprep.subr.mxu0 0.0
    %73 = vmatpush1.msra.mxu0 0.0
    %74 = vmatprep.subr.mxu0 0.0
    %75 = vmatpush1.msra.mxu0 0.0
    %76 = vmatprep.subr.mxu0 0.0
    %77 = vmatpush1.msra.mxu0 0.0
    %78 = vmatprep.subr.mxu0 0.0
    %79 = vmatpush1.msra.mxu0 0.0
    %80 = vmatprep.subr.mxu0 0.0
    %81 = vmatpush1.msra.mxu0 0.0
    %82 = vmatprep.subr.mxu0 0.0
    %83 = vmatpush1.msra.mxu0 0.0
    %84 = vmatprep.subr.mxu0 0.0
    %85 = vmatpush1.msra.mxu0 0.0
    %86 = vmatprep.subr.mxu0 0.0
    %87 = vmatpush1.msra.mxu0 0.0
    %88 = vmatprep.subr.mxu0 0.0
    %89 = vmatpush1.msra.mxu0 0.0
    %90 = vmatprep.subr.mxu0 0.0
    %91 = vmatpush1.msra.mxu0 0.0
    %92 = vmatprep.subr.mxu0 0.0
    %93 = vmatpush1.msra.mxu0 0.0
    %94 = vmatprep.subr.mxu0 0.0
    %95 = vmatpush1.msra.mxu0 0.0
    %96 = vmatprep.subr.mxu0 0.0
    %97 = vmatpush1.msra.mxu0 0.0
    %98 = vmatprep.subr.mxu0 0.0
    %99 = vmatpush1.msra.mxu0 0.0
    %100 = vmatprep.subr.mxu0 0.0
    %101 = vmatpush1.msra.mxu0 0.0
    %102 = vmatprep.subr.mxu0 0.0
    %103 = vmatpush1.msra.mxu0 0.0
    %104 = vmatprep.subr.mxu0 0.0
    %105 = vmatpush1.msra.mxu0 0.0
    %106 = vmatprep.subr.mxu0 0.0
    %107 = vmatpush1.msra.mxu0 0.0
    %108 = vmatprep.subr.mxu0 0.0
    %109 = vmatpush1.msra.mxu0 0.0
    %110 = vmatprep.subr.mxu0 0.0
    %111 = vmatpush1.msra.mxu0 0.0
    %112 = vmatprep.subr.mxu0 0.0
    %113 = vmatpush1.msra.mxu0 0.0
    %114 = vmatprep.subr.mxu0 0.0
    %115 = vmatpush1.msra.mxu0 0.0
    %116 = vmatprep.subr.mxu0 0.0
    %117 = vmatpush1.msra.mxu0 0.0
    %118 = vmatprep.subr.mxu0 0.0
    %119 = vmatpush1.msra.mxu0 0.0
    %120 = vmatprep.subr.mxu0 0.0
    %121 = vmatpush1.msra.mxu0 0.0
    %122 = vmatprep.mubr.f32.mxu0 0.0
    %123 = vmatmul.mubr.f32.gmra.mrb[0].mxu0 %v53
    %v124 = vpop.f32.mrb[0].mxu0
    %v125 = vadd.f32 %v50, %v124
    %v126 = vpop.f32.mrb[0].mxu0
    %127 = vmatprep.mubr.f32.mxu0 0.0
    %128 = vmatmul.mubr.f32.gmra.mrb[0].mxu0 %v56
    %v129 = vpop.f32.mrb[0].mxu0
    %v130 = vadd.f32 %v50, %v129
    %v131 = vpop.f32.mrb[0].mxu0
    %132 = vdwg.mxu0
    %v133 = vmax.f32 %v125, 0.0
    %v134 = vmax.f32 %v130, 0.0
    %v135 = vld [vmem:[#allocation5 + $0x20] sm:$0xff]
    %v136 = vld [vmem:[#allocation5 + $0x28] sm:$0xff]
    %v137 = vld [vmem:[#allocation5 + $0x30] sm:$0xff]
    %v138 = vld [vmem:[#allocation5 + $0x38] sm:$0xff]
    %v139 = vld [vmem:[#allocation5 + $0x40] sm:$0xff]
    %v140 = vld [vmem:[#allocation5 + $0x48] sm:$0xff]
    %v141 = vld [vmem:[#allocation5 + $0x50] sm:$0xff]
    %v142 = vld [vmem:[#allocation5 + $0x58] sm:$0xff]
    %v143 = vld [vmem:[#allocation5 + $0xa1] sm:$0x1]
    %v144 = vlaneseq
    %v145 = vshrl.u32 %v144, 7
    %v146 = vsub.s32 0, %v145
    %v147 = vrot.slane %v143, %v146
    %vm148 = vcmask 523264
    %v150 = vsel %vm148, %v133, 0
    %v153 = vsel %vm148, %v134, 0
    %155 = vmatprep.subr.mxu0 0.0
    %156 = vmatpush1.msra.mxu0 %v135
    %157 = vmatprep.subr.mxu0 0.0
    %158 = vmatpush1.msra.mxu0 %v136
    %159 = vmatprep.subr.mxu0 0.0
    %160 = vmatpush1.msra.mxu0 %v137
    %161 = vmatprep.subr.mxu0 0.0
    %162 = vmatpush1.msra.mxu0 %v138
    %163 = vmatprep.subr.mxu0 0.0
    %164 = vmatpush1.msra.mxu0 %v139
    %165 = vmatprep.subr.mxu0 0.0
    %166 = vmatpush1.msra.mxu0 %v140
    %167 = vmatprep.subr.mxu0 0.0
    %168 = vmatpush1.msra.mxu0 %v141
    %169 = vmatprep.subr.mxu0 0.0
    %170 = vmatpush1.msra.mxu0 %v142
    %171 = vmatprep.subr.mxu0 0.0
    %172 = vmatpush1.msra.mxu0 0.0
    %173 = vmatprep.subr.mxu0 0.0
    %174 = vmatpush1.msra.mxu0 0.0
    %175 = vmatprep.subr.mxu0 0.0
    %176 = vmatpush1.msra.mxu0 0.0
    %177 = vmatprep.subr.mxu0 0.0
    %178 = vmatpush1.msra.mxu0 0.0
    %179 = vmatprep.subr.mxu0 0.0
    %180 = vmatpush1.msra.mxu0 0.0
    %181 = vmatprep.subr.mxu0 0.0
    %182 = vmatpush1.msra.mxu0 0.0
    %183 = vmatprep.subr.mxu0 0.0
    %184 = vmatpush1.msra.mxu0 0.0
    %185 = vmatprep.subr.mxu0 0.0
    %186 = vmatpush1.msra.mxu0 0.0
    %187 = vmatprep.subr.mxu0 0.0
    %188 = vmatpush1.msra.mxu0 0.0
    %189 = vmatprep.subr.mxu0 0.0
    %190 = vmatpush1.msra.mxu0 0.0
    %191 = vmatprep.subr.mxu0 0.0
    %192 = vmatpush1.msra.mxu0 0.0
    %193 = vmatprep.subr.mxu0 0.0
    %194 = vmatpush1.msra.mxu0 0.0
    %195 = vmatprep.subr.mxu0 0.0
    %196 = vmatpush1.msra.mxu0 0.0
    %197 = vmatprep.subr.mxu0 0.0
    %198 = vmatpush1.msra.mxu0 0.0
    %199 = vmatprep.subr.mxu0 0.0
    %200 = vmatpush1.msra.mxu0 0.0
    %201 = vmatprep.subr.mxu0 0.0
    %202 = vmatpush1.msra.mxu0 0.0
    %203 = vmatprep.subr.mxu0 0.0
    %204 = vmatpush1.msra.mxu0 0.0
    %205 = vmatprep.subr.mxu0 0.0
    %206 = vmatpush1.msra.mxu0 0.0
    %207 = vmatprep.subr.mxu0 0.0
    %208 = vmatpush1.msra.mxu0 0.0
    %209 = vmatprep.subr.mxu0 0.0
    %210 = vmatpush1.msra.mxu0 0.0
    %211 = vmatprep.subr.mxu0 0.0
    %212 = vmatpush1.msra.mxu0 0.0
    %213 = vmatprep.subr.mxu0 0.0
    %214 = vmatpush1.msra.mxu0 0.0
    %215 = vmatprep.subr.mxu0 0.0
    %216 = vmatpush1.msra.mxu0 0.0
    %217 = vmatprep.subr.mxu0 0.0
    %218 = vmatpush1.msra.mxu0 0.0
    %219 = vmatprep.mubr.f32.mxu0 0.0
    %220 = vmatmul.mubr.f32.gmra.mrb[0].mxu0 %v150
    %v221 = vpop.f32.mrb[0].mxu0
    %v222 = vadd.f32 %v147, %v221
    %v223 = vpop.f32.mrb[0].mxu0
    %224 = vmatprep.mubr.f32.mxu0 0.0
    %225 = vmatmul.mubr.f32.gmra.mrb[0].mxu0 %v153
    %v226 = vpop.f32.mrb[0].mxu0
    %v227 = vadd.f32 %v147, %v226
    %v228 = vpop.f32.mrb[0].mxu0
    %229 = vdwg.mxu0
    %v230 = vmax.f32 %v222, 0.0
    %v231 = vmax.f32 %v227, 0.0
    %v232 = vld [vmem:[#allocation5 + $0x60] sm:$0xff]
    %v233 = vld [vmem:[#allocation5 + $0x68] sm:$0xff]
    %v234 = vld [vmem:[#allocation5 + $0x70] sm:$0xff]
    %v235 = vld [vmem:[#allocation5 + $0x78] sm:$0xff]
    %v236 = vld [vmem:[#allocation5 + $0x80] sm:$0xff]
    %v237 = vld [vmem:[#allocation5 + $0x88] sm:$0xff]
    %v238 = vld [vmem:[#allocation5 + $0x90] sm:$0xff]
    %v239 = vld [vmem:[#allocation5 + $0x98] sm:$0xff]
    %v240 = vld [vmem:[#allocation5 + $0xa2] sm:$0x1]
    %v241 = vlaneseq
    %v242 = vshrl.u32 %v241, 7
    %v243 = vsub.s32 0, %v242
    %v244 = vrot.slane %v240, %v243
    %v246 = vsel %vm148, %v230, 0
    %v249 = vsel %vm148, %v231, 0
    %251 = vmatprep.subr.mxu0 0.0
    %252 = vmatpush1.msra.mxu0 %v232
    %253 = vmatprep.subr.mxu0 0.0
    %254 = vmatpush1.msra.mxu0 %v233
    %255 = vmatprep.subr.mxu0 0.0
    %256 = vmatpush1.msra.mxu0 %v234
    %257 = vmatprep.subr.mxu0 0.0
    %258 = vmatpush1.msra.mxu0 %v235
    %259 = vmatprep.subr.mxu0 0.0
    %260 = vmatpush1.msra.mxu0 %v236
    %261 = vmatprep.subr.mxu0 0.0
    %262 = vmatpush1.msra.mxu0 %v237
    %263 = vmatprep.subr.mxu0 0.0
    %264 = vmatpush1.msra.mxu0 %v238
    %265 = vmatprep.subr.mxu0 0.0
    %266 = vmatpush1.msra.mxu0 %v239
    %267 = vmatprep.subr.mxu0 0.0
    %268 = vmatpush1.msra.mxu0 0.0
    %269 = vmatprep.subr.mxu0 0.0
    %270 = vmatpush1.msra.mxu0 0.0
    %271 = vmatprep.subr.mxu0 0.0
    %272 = vmatpush1.msra.mxu0 0.0
    %273 = vmatprep.subr.mxu0 0.0
    %274 = vmatpush1.msra.mxu0 0.0
    %275 = vmatprep.subr.mxu0 0.0
    %276 = vmatpush1.msra.mxu0 0.0
    %277 = vmatprep.subr.mxu0 0.0
    %278 = vmatpush1.msra.mxu0 0.0
    %279 = vmatprep.subr.mxu0 0.0
    %280 = vmatpush1.msra.mxu0 0.0
    %281 = vmatprep.subr.mxu0 0.0
    %282 = vmatpush1.msra.mxu0 0.0
    %283 = vmatprep.subr.mxu0 0.0
    %284 = vmatpush1.msra.mxu0 0.0
    %285 = vmatprep.subr.mxu0 0.0
    %286 = vmatpush1.msra.mxu0 0.0
    %287 = vmatprep.subr.mxu0 0.0
    %288 = vmatpush1.msra.mxu0 0.0
    %289 = vmatprep.subr.mxu0 0.0
    %290 = vmatpush1.msra.mxu0 0.0
    %291 = vmatprep.subr.mxu0 0.0
    %292 = vmatpush1.msra.mxu0 0.0
    %293 = vmatprep.subr.mxu0 0.0
    %294 = vmatpush1.msra.mxu0 0.0
    %295 = vmatprep.subr.mxu0 0.0
    %296 = vmatpush1.msra.mxu0 0.0
    %297 = vmatprep.subr.mxu0 0.0
    %298 = vmatpush1.msra.mxu0 0.0
    %299 = vmatprep.subr.mxu0 0.0
    %300 = vmatpush1.msra.mxu0 0.0
    %301 = vmatprep.subr.mxu0 0.0
    %302 = vmatpush1.msra.mxu0 0.0
    %303 = vmatprep.subr.mxu0 0.0
    %304 = vmatpush1.msra.mxu0 0.0
    %305 = vmatprep.subr.mxu0 0.0
    %306 = vmatpush1.msra.mxu0 0.0
    %307 = vmatprep.subr.mxu0 0.0
    %308 = vmatpush1.msra.mxu0 0.0
    %309 = vmatprep.subr.mxu0 0.0
    %310 = vmatpush1.msra.mxu0 0.0
    %311 = vmatprep.subr.mxu0 0.0
    %312 = vmatpush1.msra.mxu0 0.0
    %313 = vmatprep.subr.mxu0 0.0
    %314 = vmatpush1.msra.mxu0 0.0
    %315 = vmatprep.mubr.f32.mxu0 0.0
    %316 = vmatmul.mubr.f32.gmra.mrb[0].mxu0 %v246
    %v317 = vpop.f32.mrb[0].mxu0
    %v318 = vadd.f32 %v244, %v317
    %v319 = vpop.f32.mrb[0].mxu0
    %320 = vmatprep.mubr.f32.mxu0 0.0
    %321 = vmatmul.mubr.f32.gmra.mrb[0].mxu0 %v249
    %v322 = vpop.f32.mrb[0].mxu0
    %v323 = vadd.f32 %v244, %v322
    %v324 = vpop.f32.mrb[0].mxu0
    %325 = vdwg.mxu0
    %vm326 = vcmask 130048
    %v327 = vsel %vm326, %v318, -inf
    %328 = vmax.xlane.f32.xlu0 %v327
    %v329 = vpop.xlane.xlu0 %328
    %v330 = vsel %vm326, %v323, -inf
    %331 = vmax.xlane.f32.xlu0 %v330
    %v332 = vpop.xlane.xlu0 %331
    %v333 = vsub.f32 %v318, %v329
    %v334 = vsub.f32 %v323, %v332
    %v335 = vmul.f32 %v333, 1.442695
    %v336 = vpow.pop %v335
    %v337 = vmul.f32 %v334, 1.442695
    %v338 = vpow.pop %v337
    %v339 = vsel %vm326, %v336, 0.0
    %340 = vadd.xlane.f32.xlu0 %v339
    %v341 = vpop.xlane.xlu0 %340
    %v342 = vsel %vm326, %v338, 0.0
    %343 = vadd.xlane.f32.xlu0 %v342
    %v344 = vpop.xlane.xlu0 %343
    %v345 = vlog2.pop %v341
    %v346 = vmul.f32 %v345, 0.6931472
    %v347 = vlog2.pop %v344
    %v348 = vmul.f32 %v347, 0.6931472
    %v349 = vsub.f32 %v333, %v346
    %v350 = vsub.f32 %v334, %v348
    %351 = vst.msk [vmem:[#allocation7] sm:$0xff] %vm326, %v349
    %352 = vst.msk [vmem:[#allocation7 + $0x8] sm:$0xff] %vm326, %v350
    %v353 = vld [vmem:[#allocation5 + $0xa3] sm:$0x1]
    %v354 = vld [vmem:[#allocation5 + $0xa4] sm:$0x1]
    %v355 = vlaneseq
    %v356 = vshrl.u32 %v355, 7
    %v357 = vsub.s32 0, %v356
    %v358 = vrot.slane %v353, %v357
    %v359 = vmul.f32 %v230, %v358
    %v360 = vmul.f32 %v231, %v358
    %vm361 = vcmask 785408
    %v362 = vsel %vm361, %v359, 0.0
    %363 = vadd.xlane.f32.xlu0 %v362
    %v364 = vpop.xlane.xlu0 %363
    %v365 = vsel %vm361, %v360, 0.0
    %366 = vadd.xlane.f32.xlu0 %v365
    %v367 = vpop.xlane.xlu0 %366
    %v368 = vlaneseq
    %v369 = vshrl.u32 %v368, 7
    %v370 = vsub.s32 0, %v369
    %v371 = vrot.slane %v354, %v370
    %v372 = vadd.f32 %v364, %v371
    %v373 = vadd.f32 %v367, %v371
    %v374 = vtanh.pop %v372
    %v375 = vtanh.pop %v373
    %v376 = vmul.f32 %v374, 20.0
    %v377 = vmul.f32 %v375, 20.0
    %380 = vrot.lane.b32.xlu0 %v376, 16
    %v381 = vpop.permute.xlu0 %380
    %382 = vrot.lane.b32.xlu0 %v377, 16
    %v383 = vpop.permute.xlu0 %382
    %vm386 = vcmask 138368
    %387 = vst.msk [vmem:[#allocation7] sm:$0xff] %vm386, %v381
    %388 = vst.msk [vmem:[#allocation7 + $0x8] sm:$0xff] %vm386, %v383
    // Predicated region
    $region18: #{tpu_custom_call.1} parent=1 // pred_check
      _
    $region19: #{tpu_custom_call.1} parent=1 // pred_check_branch
      %390 = sbr.rel (0) target = $region21
    $region20: #{tpu_custom_call.1} parent=1 // pred_region
      %s392 = ssub.s32 256, 256
      %393 = vsyncadd [#allocation4], %s392
      %s394 = sshll.u32 [#allocation7], 4
      %s395 = int_to_ptr.vmem [resolvable:$true] %s394
      %400 = dma.vmem_to_hbm [thread:$0]  %s395, 256, %s2, [#allocation4], 128, 128, 8
    $region21: #{tpu_custom_call.1} parent=1 // pred_fallthru
      _
    // Predicated region
    $region22: #{tpu_custom_call.1} parent=1 // pred_check
      _
    $region23: #{tpu_custom_call.1} parent=1 // pred_check_branch
      %402 = sbr.rel (0) target = $region25
    $region24: #{tpu_custom_call.1} parent=1 // pred_region
      %403 = dma.done [#allocation4], 256
    $region25: #{tpu_custom_call.1} parent=1 // pred_fallthru
      _
    %404 = vsyncpa [#allocation3], 1
    %405 = vsyncpa [#allocation6], 1
    %406 = vsyncpa [#allocation4], 1

</llo_original>
